<compile_context>
chip_gen: v7x
topology: tpu7x:2x2x1
jax: 0.10.0
libtpu: 0.0.40
codegen_flags: <defaults>
</compile_context>

<pallas_src>
import jax
import jax.numpy as jnp
from jax import lax
from jax.experimental import pallas as pl
from jax.experimental.pallas import tpu as pltpu


# ------------------------------ helpers -------------------------------------

def _round_up(x, m):
    return ((x + m - 1) // m) * m


def _layer_layout(params):
    """Static per-layer (kind, row_offset, cin, cout) layout for the packed
    weight block; derived from shapes only, so it is safe under jit."""
    layout, rows = [], 0
    for (W, _) in params:
        co, ci = W.shape
        if ci == 1:                        # 1 -> co : VPU broadcast MAC
            layout.append(("bcast", rows, ci, co)); rows += co
        elif co == 1:                      # ci -> 1 : VPU mul + XLU sublane-sum
            layout.append(("reduce", rows, ci, co)); rows += ci
        else:                              # ci -> co : MXU matmul (f32 acc)
            layout.append(("dot", rows, ci, co)); rows += co
    return tuple(layout), _round_up(rows, 8)


def _pack_params(params, layout, rows):
    """Pack every folded conv/BN weight + shift into ONE (rows, 128) f32 block
    (single small constant operand for the kernel)."""
    buf = jnp.zeros((rows, 128), jnp.float32)
    for (kind, r0, ci, co), (W, s) in zip(layout, params):
        W = jnp.asarray(W, jnp.float32)
        s = jnp.asarray(s, jnp.float32).reshape(co, 1)
        if kind == "reduce":
            buf = buf.at[r0:r0 + ci, 0:1].set(W.T)        # weights as a column
            buf = buf.at[r0:r0 + 1, 1:2].set(s)           # scalar shift
        else:
            buf = buf.at[r0:r0 + co, 0:ci].set(W)
            buf = buf.at[r0:r0 + co, ci:ci + 1].set(s)
    return buf


# ------------------------------ Pallas kernel -------------------------------

def _make_densitynet_kernel(layout, chunk, n_chunks, unroll):
    """Fused conv/BN/ReLU stack over a [1, TN] channels-first lane tile,
    processed in `chunk`-lane sub-chunks so intermediates stay in vregs."""

    def kernel(x_ref, p_ref, o_ref):
        # Hoist weight/shift loads and their lane-broadcasts out of the chunk
        # loop (JAX does not CSE broadcast_in_dim).
        hoisted = []
        for (kind, r0, ci, co) in layout:
            if kind == "reduce":
                w = p_ref[r0:r0 + ci, 0:1]                    # [ci, 1]
                s = p_ref[r0:r0 + 1, 1:2]                     # [1, 1]
                hoisted.append((jnp.broadcast_to(w, (ci, chunk)),
                                jnp.broadcast_to(s, (1, chunk))))
            elif kind == "bcast":
                w = p_ref[r0:r0 + co, 0:1]                    # [co, 1]
                s = p_ref[r0:r0 + co, 1:2]                    # [co, 1]
                hoisted.append((jnp.broadcast_to(w, (co, chunk)),
                                jnp.broadcast_to(s, (co, chunk))))
            else:  # "dot"
                w = p_ref[r0:r0 + co, 0:ci]                   # [co, ci]
                s = p_ref[r0:r0 + co, ci:ci + 1]              # [co, 1]
                hoisted.append((w, jnp.broadcast_to(s, (co, chunk))))

        def body(c, carry):
            off = pl.multiple_of(c * chunk, chunk)
            # In-kernel cast: a non-f32 input costs no extra host-side HBM pass.
            y = x_ref[:, pl.ds(off, chunk)].astype(jnp.float32)   # [1, chunk]
            for (kind, _, _, _), (w, s) in zip(layout, hoisted):
                if kind == "bcast":
                    # Cin == 1: per-lane broadcast MAC on the VPU (kept in f32
                    # for the 1e-5 reference check).
                    y = w * y + s                                  # [co, chunk]
                elif kind == "dot":
                    # MXU matmul with f32 accumulation.
                    y = jnp.dot(w, y, preferred_element_type=jnp.float32) + s
                else:
                    # Cout == 1: VPU multiply + XLU sublane-sum; keeps the tiny
                    # (1 x K) matmul off the MXU entirely.
                    y = jnp.sum(w * y, axis=0, keepdims=True) + s  # [1, chunk]
                # The reference's sigmoid branch is dead code -> always ReLU.
                y = jnp.maximum(y, 0.0)
            o_ref[:, pl.ds(off, chunk)] = y.astype(o_ref.dtype)
            return carry

        lax.fori_loop(0, n_chunks, body, None, unroll=unroll)

    return kernel


# ------------------------------ wrapper -------------------------------------

def densitynet_forward(params, density_scale, *, tile_n=16384, chunk_n=512):
    """params: list of (W_folded[cout,cin], shift[cout,1]); input NCHW [B,1,S,P]."""
    B, C, S, P = density_scale.shape
    assert C == 1, "DensityNet input must have a single channel"
    M = B * S * P

    # Channels-first, lane-dense layout: the flattened (b, s, p) axis sits on
    # the 128-wide lane dimension, so the 1-channel input/output tiles are
    # unmasked full-lane loads/stores.  No host-side cast / pad / slice.
    x = density_scale.reshape(1, M)

    # Decouple the vreg working set (chunk) from the DMA/grid-step tile (TN):
    #   chunk <= 512 lanes keeps the [16,chunk] f32 intermediate in vregs;
    #   TN large (default 16K lanes) amortizes the ~0.35us/step pipeline
    #   overhead, but is capped near M/2 so v7x's two TensorCores both get work.
    chunk = min(chunk_n, _round_up(M, 128))
    TN = min(_round_up(tile_n, chunk), _round_up(max(M // 2, 1), chunk))
    n_chunks = TN // chunk
    unroll = n_chunks if n_chunks <= 4 else 4

    layout, rows = _layer_layout(params)
    packed = _pack_params(params, layout, rows)

    # Ragged last block: lanes beyond M are computed on garbage (harmless for a
    # strictly per-lane network) and their writeback is masked by Pallas.
    out = pl.pallas_call(
        _make_densitynet_kernel(layout, chunk, n_chunks, unroll),
        out_shape=jax.ShapeDtypeStruct((1, M), jnp.float32),
        grid=(pl.cdiv(M, TN),),
        in_specs=[pl.BlockSpec((1, TN), lambda i: (0, i)),
                  pl.BlockSpec(packed.shape, lambda i: (0, 0))],
        out_specs=pl.BlockSpec((1, TN), lambda i: (0, i)),
        compiler_params=pltpu.CompilerParams(
            dimension_semantics=("parallel",)),
    )(x, packed)

    return out.reshape(B, 1, S, P)


# ------------------------------ parameters ----------------------------------

def init_conv_bn_folded(key, cin, cout):
    """Conv2d(cin,cout,1) weight/bias + eval-mode BatchNorm2d folded together:
    bn(conv(x)) == W_folded @ x + shift."""
    k1, k2, k3, k4, k5, k6 = jax.random.split(key, 6)
    W = 0.1 * jax.random.normal(k1, (cout, cin), jnp.float32)
    b = 0.1 * jax.random.normal(k2, (cout,), jnp.float32)
    gamma = 1.0 + 0.1 * jax.random.normal(k3, (cout,), jnp.float32)
    beta = 0.1 * jax.random.normal(k4, (cout,), jnp.float32)
    mean = 0.1 * jax.random.normal(k5, (cout,), jnp.float32)
    var = 1.0 + 0.1 * jax.random.uniform(k6, (cout,), jnp.float32)
    eps = 1e-5
    scale = gamma / jnp.sqrt(var + eps)
    W_folded = W * scale[:, None]
    shift = (b - mean) * scale + beta
    return W_folded, shift.reshape(cout, 1)


def build_params(key, hidden_unit=(16, 8)):
    channels = [1] + list(hidden_unit) + [1]     # 1 -> 16 -> 8 -> 1
    keys = jax.random.split(key, len(channels) - 1)
    return [init_conv_bn_folded(k, cin, cout)
            for k, cin, cout in zip(keys, channels[:-1], channels[1:])]


# ------------------------------ reference -----------------------------------

def densitynet_reference(params, density_scale):
    B, C, S, P = density_scale.shape
    x = density_scale.astype(jnp.float32).reshape(1, -1)
    for (W, sh) in params:
        x = jnp.maximum(W @ x + sh, 0.0)
    return x.reshape(B, 1, S, P)


# -------------------------------- main ---------------------------------------

if __name__ == "__main__":
    B, nsample, npoint = 2, 8, 16                # input [B, 1, nsample, npoint]

    key = jax.random.PRNGKey(0)
    k_in, k_par = jax.random.split(key)
    density_scale = jax.random.uniform(
        k_in, (B, 1, nsample, npoint), jnp.float32)
    params = build_params(k_par, hidden_unit=(16, 8))

    fwd = jax.jit(densitynet_forward)
    out = fwd(params, density_scale)
    jax.block_until_ready(out)

    assert out.shape == (B, 1, nsample, npoint)
    ref = densitynet_reference(params, density_scale)
    assert jnp.allclose(out, ref, atol=1e-5, rtol=1e-5), "mismatch vs reference"
    print("KERNEL_OK")
</pallas_src>

<mosaic_0001>
module attributes {stable_mosaic.version = 11 : i64} {
  func.func @kernel(%arg0: i32, %arg1: memref<1x256xf32, #tpu.memory_space<vmem>>, %arg2: memref<32x128xf32, #tpu.memory_space<vmem>>, %arg3: memref<1x256xf32, #tpu.memory_space<vmem>>) attributes {dimension_semantics = [#tpu.dimension_semantics<parallel>], iteration_bounds = array<i64: 1>, scalar_prefetch = 0 : i64, scratch_operands = 0 : i64, tpu.core_type = #tpu.core_type<tc>, window_params = [{transform_indices = @transform_0, window_bounds = array<i64: 1, 256>}, {pipeline_mode = #tpu.pipeline_mode<synchronous>, transform_indices = @transform_1, window_bounds = array<i64: 32, 128>}, {transform_indices = @transform_2, window_bounds = array<i64: 1, 256>}]} {
    %c0 = arith.constant 0 : index
    %c0_0 = arith.constant 0 : index
    %0 = vector.load %arg2[%c0, %c0_0] : memref<32x128xf32, #tpu.memory_space<vmem>>, vector<16x1xf32>
    %c0_1 = arith.constant 0 : index
    %c1 = arith.constant 1 : index
    %1 = vector.load %arg2[%c0_1, %c1] : memref<32x128xf32, #tpu.memory_space<vmem>>, vector<16x1xf32>
    %2 = vector.shape_cast %0 : vector<16x1xf32> to vector<16x1xf32>
    %3 = vector.broadcast %2 : vector<16x1xf32> to vector<16x256xf32>
    %4 = vector.shape_cast %1 : vector<16x1xf32> to vector<16x1xf32>
    %5 = vector.broadcast %4 : vector<16x1xf32> to vector<16x256xf32>
    %c16 = arith.constant 16 : index
    %c0_2 = arith.constant 0 : index
    %6 = vector.load %arg2[%c16, %c0_2] : memref<32x128xf32, #tpu.memory_space<vmem>>, vector<8x16xf32>
    %c16_3 = arith.constant 16 : index
    %c16_4 = arith.constant 16 : index
    %7 = vector.load %arg2[%c16_3, %c16_4] : memref<32x128xf32, #tpu.memory_space<vmem>>, vector<8x1xf32>
    %8 = vector.shape_cast %7 : vector<8x1xf32> to vector<8x1xf32>
    %9 = vector.broadcast %8 : vector<8x1xf32> to vector<8x256xf32>
    %c24 = arith.constant 24 : index
    %c0_5 = arith.constant 0 : index
    %10 = vector.load %arg2[%c24, %c0_5] : memref<32x128xf32, #tpu.memory_space<vmem>>, vector<8x1xf32>
    %c24_6 = arith.constant 24 : index
    %c1_7 = arith.constant 1 : index
    %11 = vector.load %arg2[%c24_6, %c1_7] : memref<32x128xf32, #tpu.memory_space<vmem>>, vector<1x1xf32>
    %12 = vector.shape_cast %10 : vector<8x1xf32> to vector<8x1xf32>
    %13 = vector.broadcast %12 : vector<8x1xf32> to vector<8x256xf32>
    %14 = vector.shape_cast %11 : vector<1x1xf32> to vector<1x1xf32>
    %15 = vector.broadcast %14 : vector<1x1xf32> to vector<1x256xf32>
    %c0_i32 = arith.constant 0 : i32
    %c256_i32 = arith.constant 256 : i32
    %16 = arith.muli %c0_i32, %c256_i32 : i32
    %17 = tpu.assume_multiple %16, 256 : i32
    %c0_8 = arith.constant 0 : index
    %18 = arith.index_cast %17 : i32 to index
    %19 = vector.load %arg1[%c0_8, %18] : memref<1x256xf32, #tpu.memory_space<vmem>>, vector<1x256xf32>
    %20 = vector.broadcast %19 : vector<1x256xf32> to vector<16x256xf32>
    %21 = arith.mulf %3, %20 : vector<16x256xf32>
    %22 = arith.addf %21, %5 : vector<16x256xf32>
    %cst = arith.constant 0.000000e+00 : f32
    %23 = vector.broadcast %cst : f32 to vector<16x256xf32>
    %24 = arith.maximumf %22, %23 : vector<16x256xf32>
    %cst_9 = arith.constant dense<0.000000e+00> : vector<8x256xf32>
    %25 = tpu.matmul %6, %24, %cst_9 {dimension_numbers = #tpu.dot_dimension_numbers<[1], [0], [0], [1], [0, 0, 1, 1], [], []>} : vector<8x16xf32>, vector<16x256xf32>, vector<8x256xf32> -> vector<8x256xf32>
    %26 = arith.addf %25, %9 : vector<8x256xf32>
    %cst_10 = arith.constant 0.000000e+00 : f32
    %27 = vector.broadcast %cst_10 : f32 to vector<8x256xf32>
    %28 = arith.maximumf %26, %27 : vector<8x256xf32>
    %29 = arith.mulf %13, %28 : vector<8x256xf32>
    %cst_11 = arith.constant dense<0.000000e+00> : vector<256xf32>
    %30 = vector.multi_reduction <add>, %29, %cst_11 [0] : vector<8x256xf32> to vector<256xf32>
    %31 = vector.shape_cast %30 : vector<256xf32> to vector<1x256xf32>
    %32 = arith.addf %31, %15 : vector<1x256xf32>
    %cst_12 = arith.constant 0.000000e+00 : f32
    %33 = vector.broadcast %cst_12 : f32 to vector<1x256xf32>
    %34 = arith.maximumf %32, %33 : vector<1x256xf32>
    %c0_13 = arith.constant 0 : index
    %35 = arith.index_cast %17 : i32 to index
    %36 = vector.load %arg3[%c0_13, %35] : memref<1x256xf32, #tpu.memory_space<vmem>>, vector<1x256xf32>
    tpu.vector_store %arg3[%c0_13, %35], %34 {strides = array<i32>} : memref<1x256xf32, #tpu.memory_space<vmem>>, vector<1x256xf32>,
    %c1_i32 = arith.constant 1 : i32
    return
  }
  func.func @transform_0(%arg0: i32) -> (i32, i32) {
    %c0_i32 = arith.constant 0 : i32
    %c0_i32_0 = arith.constant 0 : i32
    return %c0_i32, %arg0 : i32, i32
  }
  func.func @transform_1(%arg0: i32) -> (i32, i32) {
    %c0_i32 = arith.constant 0 : i32
    %c0_i32_0 = arith.constant 0 : i32
    %c0_i32_1 = arith.constant 0 : i32
    return %c0_i32, %c0_i32_0 : i32, i32
  }
  func.func @transform_2(%arg0: i32) -> (i32, i32) {
    %c0_i32 = arith.constant 0 : i32
    %c0_i32_0 = arith.constant 0 : i32
    return %c0_i32, %arg0 : i32, i32
  }
}

</mosaic_0001>

<llo_original>
// kernel: densitynet_forward.1
$region0: #{densitynet_forward.1}
  #allocation0 [shape = 'u32[]', space=smem, size = 0x4, offset = 0x4, fixed_abs, tag = 'smem constant byte address 0x4 - core index']
  #allocation1 [shape = 'u32[144,128]{1,0:T(1,128)}', space=vmem, size = 0x12000, scoped, tag = 'internal scratch']
  %s0 = inlined_call_operand.vmem [shape: f32[1,256], index: 0, kind: input, shape index: {}]
  %s1 = inlined_call_operand.vmem [shape: f32[32,128], index: 1, kind: input, shape index: {}]
  %s2 = inlined_call_operand.vmem [shape: f32[1,256], index: 2, kind: output, shape index: {}]
  %s3 = sld [smem:[#allocation0]]
  $region18: #{densitynet_forward.1} parent=0
    _
  %s5 = ssub.s32 1, %s3
  %s6 = scalar_select 0, %s5, %s3
  // Predicated region
  $region2: #{densitynet_forward.1} parent=0 // pred_check
    _
  $region3: #{densitynet_forward.1} parent=0 // pred_check_branch
    %8 = sbr.rel (0) target = $region5
  $region4: #{densitynet_forward.1} parent=0 // pred_region
    _
  $region5: #{densitynet_forward.1} parent=0 // pred_fallthru
    _
  // Predicated region
  $region6: #{densitynet_forward.1} parent=0 // pred_check
    _
  $region7: #{densitynet_forward.1} parent=0 // pred_check_branch
    %10 = sbr.rel (0) target = $region9
  $region8: #{densitynet_forward.1} parent=0 // pred_region
    _
  $region9: #{densitynet_forward.1} parent=0 // pred_fallthru
    _
  %v11 = vld [vmem:[%s1] sm:$0xff]
  %v12 = vld [vmem:[%s1 + $0x8] sm:$0xff]
  %14 = vset.pattern.permute.xlu0 0
  %15 = vperm.xlu0 %14, %v11
  %v16 = vpop.permute.xlu0 %15
  %19 = vset.pattern.permute.xlu0 0
  %20 = vperm.xlu0 %19, %v12
  %v21 = vpop.permute.xlu0 %20
  %23 = vset.pattern.permute.xlu0 1
  %24 = vperm.xlu0 %23, %v11
  %v25 = vpop.permute.xlu0 %24
  %27 = vset.pattern.permute.xlu0 1
  %28 = vperm.xlu0 %27, %v12
  %v29 = vpop.permute.xlu0 %28
  %v31 = vld [vmem:[%s1 + $0x10] sm:$0xff]
  %33 = vset.pattern.permute.xlu0 16
  %34 = vperm.xlu0 %33, %v31
  %v35 = vpop.permute.xlu0 %34
  %v37 = vld [vmem:[%s1 + $0x18] sm:$0xff]
  %v38 = vld [vmem:[%s1 + $0x18] sm:$0x1]
  %40 = vset.pattern.permute.xlu0 0
  %41 = vperm.xlu0 %40, %v37
  %v42 = vpop.permute.xlu0 %41
  %45 = vset.pattern.permute.xlu0 1
  %46 = vperm.xlu0 %45, %v38
  %v47 = vpop.permute.xlu0 %46
  %v49 = vld [vmem:[%s0] sm:$0x3]
  %v51 = vlaneseq
  %v52 = vshrl.u32 %v51, 7
  %v53 = vsub.s32 0, %v52
  %v54 = vrot.slane %v49, %v53
  %v55 = vlaneseq
  %v56 = vshrl.u32 %v55, 7
  %v57 = vsub.s32 1, %v56
  %v58 = vrot.slane %v49, %v57
  %v61 = vmul.f32 %v16, %v54
  %v62 = vmul.f32 %v16, %v58
  %v63 = vmul.f32 %v21, %v54
  %v64 = vmul.f32 %v21, %v58
  %v65 = vadd.f32 %v61, %v25
  %v66 = vadd.f32 %v62, %v25
  %v67 = vadd.f32 %v63, %v29
  %v68 = vadd.f32 %v64, %v29
  %v69 = vmax.f32 %v65, 0.0
  %v70 = vmax.f32 %v66, 0.0
  %v71 = vmax.f32 %v67, 0.0
  %v72 = vmax.f32 %v68, 0.0
  %vm73 = vcmask 130048
  %v74 = vsel %vm73, %v31, 0
  %76 = vmatprep.subr.mxu0 %v70
  %77 = vmatpush1.msra.mxu0 %v69
  %78 = vmatprep.subr.mxu0 %v72
  %79 = vmatpush1.msra.mxu0 %v71
  %80 = vmatprep.subr.mxu0 0.0
  %81 = vmatpush1.msra.mxu0 0.0
  %82 = vmatprep.subr.mxu0 0.0
  %83 = vmatpush1.msra.mxu0 0.0
  %84 = vmatprep.subr.mxu0 0.0
  %85 = vmatpush1.msra.mxu0 0.0
  %86 = vmatprep.subr.mxu0 0.0
  %87 = vmatpush1.msra.mxu0 0.0
  %88 = vmatprep.subr.mxu0 0.0
  %89 = vmatpush1.msra.mxu0 0.0
  %90 = vmatprep.subr.mxu0 0.0
  %91 = vmatpush1.msra.mxu0 0.0
  %92 = vmatprep.subr.mxu0 0.0
  %93 = vmatpush1.msra.mxu0 0.0
  %94 = vmatprep.subr.mxu0 0.0
  %95 = vmatpush1.msra.mxu0 0.0
  %96 = vmatprep.subr.mxu0 0.0
  %97 = vmatpush1.msra.mxu0 0.0
  %98 = vmatprep.subr.mxu0 0.0
  %99 = vmatpush1.msra.mxu0 0.0
  %100 = vmatprep.subr.mxu0 0.0
  %101 = vmatpush1.msra.mxu0 0.0
  %102 = vmatprep.subr.mxu0 0.0
  %103 = vmatpush1.msra.mxu0 0.0
  %104 = vmatprep.subr.mxu0 0.0
  %105 = vmatpush1.msra.mxu0 0.0
  %106 = vmatprep.subr.mxu0 0.0
  %107 = vmatpush1.msra.mxu0 0.0
  %108 = vmatprep.subr.mxu0 0.0
  %109 = vmatpush1.msra.mxu0 0.0
  %110 = vmatprep.subr.mxu0 0.0
  %111 = vmatpush1.msra.mxu0 0.0
  %112 = vmatprep.subr.mxu0 0.0
  %113 = vmatpush1.msra.mxu0 0.0
  %114 = vmatprep.subr.mxu0 0.0
  %115 = vmatpush1.msra.mxu0 0.0
  %116 = vmatprep.subr.mxu0 0.0
  %117 = vmatpush1.msra.mxu0 0.0
  %118 = vmatprep.subr.mxu0 0.0
  %119 = vmatpush1.msra.mxu0 0.0
  %120 = vmatprep.subr.mxu0 0.0
  %121 = vmatpush1.msra.mxu0 0.0
  %122 = vmatprep.subr.mxu0 0.0
  %123 = vmatpush1.msra.mxu0 0.0
  %124 = vmatprep.subr.mxu0 0.0
  %125 = vmatpush1.msra.mxu0 0.0
  %126 = vmatprep.subr.mxu0 0.0
  %127 = vmatpush1.msra.mxu0 0.0
  %128 = vmatprep.subr.mxu0 0.0
  %129 = vmatpush1.msra.mxu0 0.0
  %130 = vmatprep.subr.mxu0 0.0
  %131 = vmatpush1.msra.mxu0 0.0
  %132 = vmatprep.subr.mxu0 0.0
  %133 = vmatpush1.msra.mxu0 0.0
  %134 = vmatprep.subr.mxu0 0.0
  %135 = vmatpush1.msra.mxu0 0.0
  %136 = vmatprep.subr.mxu0 0.0
  %137 = vmatpush1.msra.mxu0 0.0
  %138 = vmatprep.subr.mxu0 0.0
  %139 = vmatpush1.msra.mxu0 0.0
  %140 = vmatprep.mubr.f32.mxu0 0.0
  %141 = vmatmul.mubr.f32.gmra.mrb[0].mxu0 %v74
  %v142 = vpop.f32.mrb[0].mxu0
  %v143 = vadd.f32 %v35, %v142
  %v144 = vpop.f32.mrb[0].mxu0
  %v145 = vadd.f32 %v35, %v144
  %146 = vdwg.mxu0
  %v147 = vmax.f32 %v143, 0.0
  %v148 = vmax.f32 %v145, 0.0
  %v149 = vmul.f32 %v42, %v147
  %v150 = vmul.f32 %v42, %v148
  %v151 = vrot.slane %v149, 4
  %v152 = vadd.f32 %v149, %v151
  %v153 = vrot.slane %v152, 2
  %v154 = vadd.f32 %v152, %v153
  %v155 = vrot.slane %v154, 1
  %v156 = vadd.f32 %v154, %v155
  %v157 = vrot.slane %v150, 4
  %v158 = vadd.f32 %v150, %v157
  %v159 = vrot.slane %v158, 2
  %v160 = vadd.f32 %v158, %v159
  %v161 = vrot.slane %v160, 1
  %v162 = vadd.f32 %v160, %v161
  %v163 = vadd.f32 %v156, %v47
  %v164 = vadd.f32 %v162, %v47
  %v165 = vmax.f32 %v163, 0.0
  %v166 = vmax.f32 %v164, 0.0
  %v169 = vcombine.low %v165, %v166
  %v171 = vunpack.c.l.s4 1966171168
  %v172 = vunpack.c.0.s8 %v171
  %v173 = vlaneseq
  %v174 = vshrl.u32 %v173, 7
  %v175 = vsub.s32 %v172, %v174
  %v176 = vrot.slane %v169, %v175
  %v178 = vunpack.c.l.s4 1966171168
  %v179 = vunpack.c.0.s8 %v178
  %v180 = vlaneseq
  %v181 = vshrl.u32 %v180, 7
  %v182 = vsub.s32 %v179, %v181
  %v183 = vrot.slane %v176, %v182
  %v185 = vlaneseq
  %vm186 = vcmp.ge.s32.totalorder %v185, 0
  %vm187 = vcmp.lt.s32.totalorder %v185, 256
  %vm188 = vmand %vm186, %vm187
  %189 = vst.msk [vmem:[%s2] sm:$0x3] %vm188, %v183
  // Predicated region
  $region10: #{densitynet_forward.1} parent=0 // pred_check
    _
  $region11: #{densitynet_forward.1} parent=0 // pred_check_branch
    %191 = sbr.rel (0) target = $region13
  $region12: #{densitynet_forward.1} parent=0 // pred_region
    _
  $region13: #{densitynet_forward.1} parent=0 // pred_fallthru
    _
  // Predicated region
  $region14: #{densitynet_forward.1} parent=0 // pred_check
    _
  $region15: #{densitynet_forward.1} parent=0 // pred_check_branch
    %193 = sbr.rel (0) target = $region17
  $region16: #{densitynet_forward.1} parent=0 // pred_region
    _
  $region17: #{densitynet_forward.1} parent=0 // pred_fallthru
    _

</llo_original>
